<compile_context>
chip_gen: v5e
topology: v5e:2x2
jax: 0.10.0
libtpu: 0.0.40
codegen_flags: <defaults>
</compile_context>

<pallas_src>
import functools

import jax
import jax.numpy as jnp
from jax.experimental import pallas as pl
from jax.experimental.pallas import tpu as pltpu


def _transe_loss_kernel(hs_ref, ts_ref, rs_ref, y_ref, w_ref, b_ref, out_ref,
                        *, batch, tile_rows, pack, needs_mask):
    f32 = jnp.float32
    i = pl.program_id(0)

    # x = hs + rs - ts, upcast in-kernel (inputs stream in native dtype).
    x = (hs_ref[...].astype(f32) + rs_ref[...].astype(f32)
         - ts_ref[...].astype(f32))                       # (TB, P*D)

    # Linear(dim, 1) for all P packed samples at once: one MXU matmul against
    # the block-diagonal weight (P*D, P) -> logits z of shape (TB, P).
    z = jnp.dot(x, w_ref[...], preferred_element_type=f32) + b_ref[0, 0]

    y = y_ref[...]                                        # (TB, P), labels in {0,1}

    # Numerically stable BCE-with-logits (matches torch):
    #   l = max(z, 0) - z*y + log(1 + exp(-|z|))
    per = jnp.maximum(z, 0.0) - z * y + jnp.log1p(jnp.exp(-jnp.abs(z)))

    if needs_mask:
        # Ragged last block / pad-to-P tail: zero out anything past the true
        # batch (also neutralizes undefined data in clipped edge blocks).
        row = jax.lax.broadcasted_iota(jnp.int32, (tile_rows, pack), 0)
        col = jax.lax.broadcasted_iota(jnp.int32, (tile_rows, pack), 1)
        sample = (row + i * tile_rows) * pack + col
        per = jnp.where(sample < batch, per, 0.0)

    # Per-tile partial sum, splat across this tile's (8,128) output block.
    tile_sum = jnp.sum(per, keepdims=True)                # (1, 1)
    out_ref[...] = jnp.broadcast_to(tile_sum, (8, 128))


def transe_loss(hs, ts, rs, rels, weight, bias, *, tile_rows=None):
    """hs/ts/rs: (B, D); rels: (B, R); weight: (1, D) nn.Linear W[out,in]; bias: (1,)/(1,1)."""
    B, D = hs.shape
    f32 = jnp.float32

    # Lane-packing factor: put P samples side by side along the 128-lane axis.
    P = 128 // D if (D <= 128 and 128 % D == 0) else 1
    DP = P * D

    # label = (rels[:, 1:].sum(1) > 0): one cheap mem-bound pass in the
    # wrapper; streamed as a slim (Bp, P) tensor instead of lane-sparse rels.
    label = (jnp.sum(rels[:, 1:].astype(f32), axis=1) > 0).astype(f32)      # (B,)

    # Pad only to the next multiple of P (tiny, and only when B % P != 0);
    # the packed reshape itself is a free row-major relayout.
    Bp = pl.cdiv(B, P)
    B_pp = Bp * P

    def pack_rows(a, width):
        if B_pp != B:
            a = jnp.pad(a, ((0, B_pp - B),) + ((0, 0),) * (a.ndim - 1))
        return a.reshape(Bp, width)

    hs_p, ts_p, rs_p = pack_rows(hs, DP), pack_rows(ts, DP), pack_rows(rs, DP)
    y_p = pack_rows(label, P)

    # Block-diagonal weight (P*D, P): W_bd[g*D + d, g] = weight[d]; bias -> SMEM.
    w_bd = jnp.kron(jnp.eye(P, dtype=f32), weight.astype(f32).reshape(D, 1))
    b_p = bias.astype(f32).reshape(1, 1)

    # Generation-aware tile size / VMEM budget (v7x has only 64 MiB VMEM/TC).
    if tile_rows is None:
        vmem_cap = 64 * 1024 * 1024
        try:
            vmem_cap = getattr(pltpu.get_tpu_info(), "vmem_capacity_bytes", vmem_cap)
        except Exception:
            pass
        if vmem_cap >= 100 * 1024 * 1024:
            tile_rows, vmem_limit = 8192, 64 * 1024 * 1024     # v5e / v6e
        else:
            tile_rows, vmem_limit = 4096, 40 * 1024 * 1024     # v7x
    else:
        vmem_limit = 48 * 1024 * 1024

    if Bp <= tile_rows:
        TB, n_tiles = Bp, 1                  # single full-array block
    else:
        TB = tile_rows                       # multiple of 8 by construction
        n_tiles = pl.cdiv(Bp, TB)            # ragged last block, masked in-kernel
    needs_mask = (n_tiles * TB * P) != B

    kernel = functools.partial(
        _transe_loss_kernel, batch=B, tile_rows=TB, pack=P, needs_mask=needs_mask)

    grid_spec = pltpu.PrefetchScalarGridSpec(
        num_scalar_prefetch=0,
        grid=(n_tiles,),
        in_specs=[
            pl.BlockSpec((TB, DP), lambda i: (i, 0)),           # hs   (streamed)
            pl.BlockSpec((TB, DP), lambda i: (i, 0)),           # ts   (streamed)
            pl.BlockSpec((TB, DP), lambda i: (i, 0)),           # rs   (streamed)
            pl.BlockSpec((TB, P), lambda i: (i, 0)),            # labels (streamed)
            pl.BlockSpec((DP, P), lambda i: (0, 0)),            # block-diag weight (resident)
            pl.BlockSpec(memory_space=pltpu.MemorySpace.SMEM),  # bias scalar
        ],
        out_specs=pl.BlockSpec((8, 128), lambda i: (i, 0)),     # per-tile partial sums
    )

    itemsize = jnp.dtype(hs.dtype).itemsize
    cost = pl.CostEstimate(
        flops=int(2 * Bp * DP * P + 10 * Bp * P),
        transcendentals=int(2 * Bp * P),
        bytes_accessed=int(3 * Bp * DP * itemsize + Bp * P * 4 + DP * P * 4
                           + 8 + n_tiles * 8 * 128 * 4),
    )

    partials = pl.pallas_call(
        kernel,
        out_shape=jax.ShapeDtypeStruct((n_tiles * 8, 128), f32),
        grid_spec=grid_spec,
        compiler_params=pltpu.CompilerParams(
            dimension_semantics=("parallel",),   # independent per-tile partials
            vmem_limit_bytes=vmem_limit,
        ),
        cost_estimate=cost,
    )(hs_p, ts_p, rs_p, y_p, w_bd, b_p)

    # Each (8,128) block holds its tile's partial sum; take one value per tile
    # and finish the mean over the TRUE batch size in plain JAX.
    tile_sums = partials.reshape(n_tiles, 8 * 128)[:, 0]
    return jnp.sum(tile_sums) / B


def _reference(hs, ts, rs, rels, weight, bias):
    z = ((hs + rs - ts) @ weight.reshape(-1, 1) + bias.reshape(1, 1))[:, 0]
    y = (rels[:, 1:].sum(axis=1) > 0).astype(jnp.float32)
    per = jnp.maximum(z, 0.0) - z * y + jnp.log1p(jnp.exp(-jnp.abs(z)))
    return jnp.mean(per)


if __name__ == "__main__":
    key = jax.random.PRNGKey(0)
    D, R = 32, 4  # embedding dim, number of relation columns

    def make_inputs(k, B):
        k1, k2, k3, k4, k5, k6 = jax.random.split(k, 6)
        hs = jax.random.normal(k1, (B, D), jnp.float32)
        ts = jax.random.normal(k2, (B, D), jnp.float32)
        rs = jax.random.normal(k3, (B, D), jnp.float32)
        rels = (jax.random.uniform(k4, (B, R)) > 0.5).astype(jnp.float32)
        bound = 1.0 / (D ** 0.5)       # deterministic nn.Linear(dim,1)-style init
        weight = jax.random.uniform(k5, (1, D), jnp.float32, -bound, bound)
        bias = jax.random.uniform(k6, (1, 1), jnp.float32, -bound, bound)
        return hs, ts, rs, rels, weight, bias

    checks = [
        dict(B=64, tile_rows=None),   # P-aligned batch, single tile
        dict(B=70, tile_rows=None),   # unaligned batch -> pad-to-P + in-kernel mask
        dict(B=200, tile_rows=8),     # multi-tile parallel grid, ragged last block
    ]
    for cfg in checks:
        args = make_inputs(key, cfg["B"])
        loss = transe_loss(*args, tile_rows=cfg["tile_rows"])
        jax.block_until_ready(loss)
        ref = _reference(*args)
        assert abs(float(loss) - float(ref)) < 2e-3, (cfg, float(loss), float(ref))
    print("KERNEL_OK")
</pallas_src>

<mosaic_0001>
module attributes {stable_mosaic.version = 11 : i64} {
  func.func @_transe_loss_kernel(%arg0: i32, %arg1: memref<16x128xf32, #tpu.memory_space<vmem>>, %arg2: memref<16x128xf32, #tpu.memory_space<vmem>>, %arg3: memref<16x128xf32, #tpu.memory_space<vmem>>, %arg4: memref<16x4xf32, #tpu.memory_space<vmem>>, %arg5: memref<128x4xf32, #tpu.memory_space<vmem>>, %arg6: memref<1x1xf32, #tpu.memory_space<smem>>, %arg7: memref<8x128xf32, #tpu.memory_space<vmem>>) attributes {dimension_semantics = [#tpu.dimension_semantics<parallel>], iteration_bounds = array<i64: 1>, scalar_prefetch = 0 : i64, scratch_operands = 0 : i64, tpu.core_type = #tpu.core_type<tc>, window_params = [{transform_indices = @transform_0, window_bounds = array<i64: 16, 128>}, {transform_indices = @transform_1, window_bounds = array<i64: 16, 128>}, {transform_indices = @transform_2, window_bounds = array<i64: 16, 128>}, {transform_indices = @transform_3, window_bounds = array<i64: 16, 4>}, {pipeline_mode = #tpu.pipeline_mode<synchronous>, transform_indices = @transform_4, window_bounds = array<i64: 128, 4>}, {transform_indices = @transform_5, window_bounds = array<i64: 1, 1>}, {transform_indices = @transform_6, window_bounds = array<i64: 8, 128>}]} {
    %c0 = arith.constant 0 : index
    %c0_0 = arith.constant 0 : index
    %0 = vector.load %arg1[%c0, %c0_0] : memref<16x128xf32, #tpu.memory_space<vmem>>, vector<16x128xf32>
    %c0_1 = arith.constant 0 : index
    %c0_2 = arith.constant 0 : index
    %1 = vector.load %arg3[%c0_1, %c0_2] : memref<16x128xf32, #tpu.memory_space<vmem>>, vector<16x128xf32>
    %2 = arith.addf %0, %1 : vector<16x128xf32>
    %c0_3 = arith.constant 0 : index
    %c0_4 = arith.constant 0 : index
    %3 = vector.load %arg2[%c0_3, %c0_4] : memref<16x128xf32, #tpu.memory_space<vmem>>, vector<16x128xf32>
    %4 = arith.subf %2, %3 : vector<16x128xf32>
    %c0_5 = arith.constant 0 : index
    %c0_6 = arith.constant 0 : index
    %5 = vector.load %arg5[%c0_5, %c0_6] : memref<128x4xf32, #tpu.memory_space<vmem>>, vector<128x4xf32>
    %cst = arith.constant dense<0.000000e+00> : vector<16x4xf32>
    %6 = tpu.matmul %4, %5, %cst {dimension_numbers = #tpu.dot_dimension_numbers<[1], [0], [0], [1], [0, 0, 1, 1], [], []>} : vector<16x128xf32>, vector<128x4xf32>, vector<16x4xf32> -> vector<16x4xf32>
    %c0_7 = arith.constant 0 : index
    %c0_8 = arith.constant 0 : index
    %7 = memref.load %arg6[%c0_7, %c0_8] : memref<1x1xf32, #tpu.memory_space<smem>>
    %8 = vector.broadcast %7 : f32 to vector<16x4xf32>
    %9 = arith.addf %6, %8 : vector<16x4xf32>
    %c0_9 = arith.constant 0 : index
    %c0_10 = arith.constant 0 : index
    %10 = vector.load %arg4[%c0_9, %c0_10] : memref<16x4xf32, #tpu.memory_space<vmem>>, vector<16x4xf32>
    %cst_11 = arith.constant 0.000000e+00 : f32
    %11 = vector.broadcast %cst_11 : f32 to vector<16x4xf32>
    %12 = arith.maximumf %9, %11 : vector<16x4xf32>
    %13 = arith.mulf %9, %10 : vector<16x4xf32>
    %14 = arith.subf %12, %13 : vector<16x4xf32>
    %15 = math.absf %9 : vector<16x4xf32>
    %cst_12 = arith.constant 0.000000e+00 : f32
    %16 = vector.broadcast %cst_12 : f32 to vector<16x4xf32>
    %17 = arith.subf %16, %15 : vector<16x4xf32>
    %18 = math.exp %17 : vector<16x4xf32>
    %19 = math.log1p %18 : vector<16x4xf32>
    %20 = arith.addf %14, %19 : vector<16x4xf32>
    %21 = vector.shape_cast %20 : vector<16x4xf32> to vector<1x16x4xf32>
    %cst_13 = arith.constant dense<0.000000e+00> : vector<1xf32>
    %22 = vector.multi_reduction <add>, %21, %cst_13 [1, 2] : vector<1x16x4xf32> to vector<1xf32>
    %23 = vector.shape_cast %22 : vector<1xf32> to vector<1x1x1xf32>
    %24 = vector.extract %23[0, 0, 0] : f32 from vector<1x1x1xf32>
    %25 = vector.broadcast %24 : f32 to vector<1x1xf32>
    %26 = vector.shape_cast %25 : vector<1x1xf32> to vector<1x1xf32>
    %27 = vector.broadcast %26 : vector<1x1xf32> to vector<8x128xf32>
    %c0_14 = arith.constant 0 : index
    %c0_15 = arith.constant 0 : index
    %28 = vector.load %arg7[%c0_14, %c0_15] : memref<8x128xf32, #tpu.memory_space<vmem>>, vector<8x128xf32>
    tpu.vector_store %arg7[%c0_14, %c0_15], %27 {strides = array<i32>} : memref<8x128xf32, #tpu.memory_space<vmem>>, vector<8x128xf32>,
    return
  }
  func.func @transform_0(%arg0: i32) -> (i32, i32) {
    %c0_i32 = arith.constant 0 : i32
    %c0_i32_0 = arith.constant 0 : i32
    return %arg0, %c0_i32 : i32, i32
  }
  func.func @transform_1(%arg0: i32) -> (i32, i32) {
    %c0_i32 = arith.constant 0 : i32
    %c0_i32_0 = arith.constant 0 : i32
    return %arg0, %c0_i32 : i32, i32
  }
  func.func @transform_2(%arg0: i32) -> (i32, i32) {
    %c0_i32 = arith.constant 0 : i32
    %c0_i32_0 = arith.constant 0 : i32
    return %arg0, %c0_i32 : i32, i32
  }
  func.func @transform_3(%arg0: i32) -> (i32, i32) {
    %c0_i32 = arith.constant 0 : i32
    %c0_i32_0 = arith.constant 0 : i32
    return %arg0, %c0_i32 : i32, i32
  }
  func.func @transform_4(%arg0: i32) -> (i32, i32) {
    %c0_i32 = arith.constant 0 : i32
    %c0_i32_0 = arith.constant 0 : i32
    %c0_i32_1 = arith.constant 0 : i32
    return %c0_i32, %c0_i32_0 : i32, i32
  }
  func.func @transform_5(%arg0: i32) -> (i32, i32) {
    %c0_i32 = arith.constant 0 : i32
    %c0_i32_0 = arith.constant 0 : i32
    %c0_i32_1 = arith.constant 0 : i32
    return %c0_i32, %c0_i32_0 : i32, i32
  }
  func.func @transform_6(%arg0: i32) -> (i32, i32) {
    %c0_i32 = arith.constant 0 : i32
    %c0_i32_0 = arith.constant 0 : i32
    return %arg0, %c0_i32 : i32, i32
  }
}

</mosaic_0001>

<llo_original>
// kernel: tpu_custom_call.1
$region0: #{tpu_custom_call.1}
  #allocation0 [shape = 'u32[]', space=smem, size = 0x4, offset = 0x4, fixed_abs, tag = 'smem constant byte address 0x4 - core index']
  #allocation1 [shape = 'u32[72,128]{1,0:T(1,128)}', space=vmem, size = 0x9000, scoped, tag = 'internal scratch']
  #allocation2 [shape = 'f32[1,1]{1,0:T(1,128)S(6)}', space=smem, size = 0x200, scoped, tag = 'scoped memory for tpu_custom_call.1']
  %s0 = inlined_call_operand.vmem [shape: f32[16,128], index: 0, kind: input, shape index: {}]
  %s1 = inlined_call_operand.vmem [shape: f32[16,128], index: 1, kind: input, shape index: {}]
  %s2 = inlined_call_operand.vmem [shape: f32[16,128], index: 2, kind: input, shape index: {}]
  %s3 = inlined_call_operand.vmem [shape: f32[16,4], index: 3, kind: input, shape index: {}]
  %s4 = inlined_call_operand.vmem [shape: f32[128,4], index: 4, kind: input, shape index: {}]
  %s5 = inlined_call_operand.<no memory space> [shape: f32[1,1], index: 5, kind: input, shape index: {}]
  %s6 = inlined_call_operand.hbm [shape: f32[8,128], index: 6, kind: output, shape index: {}]
  %s7 = sld [smem:[#allocation0]]
  $region34: #{tpu_custom_call.1} parent=0
    _
  %s9 = ssub.s32 1, %s7
  %s10 = scalar_select 0, %s9, %s7
  %11 = sst [smem:[#allocation2]] %s5
  $region1: #{tpu_custom_call.1} parent=0
    #allocation3 [shape = 'u8[4096]{0}', space=vmem, size = 0x1000, scoped, tag = 'output window, operand 0, single buffered']
    #allocation4 [shape = 's32[1]{0}', space=sflag, size = 0x4, scoped, tag = 'scoped memory for tpu_custom_call.1']
    %12 = vsyncpa [#allocation4], 0
    // Predicated region
    $region2: #{tpu_custom_call.1} parent=1 // pred_check
      _
    $region3: #{tpu_custom_call.1} parent=1 // pred_check_branch
      %14 = sbr.rel (0) target = $region5
    $region4: #{tpu_custom_call.1} parent=1 // pred_region
      _
    $region5: #{tpu_custom_call.1} parent=1 // pred_fallthru
      _
    // Predicated region
    $region6: #{tpu_custom_call.1} parent=1 // pred_check
      _
    $region7: #{tpu_custom_call.1} parent=1 // pred_check_branch
      %16 = sbr.rel (0) target = $region9
    $region8: #{tpu_custom_call.1} parent=1 // pred_region
      _
    $region9: #{tpu_custom_call.1} parent=1 // pred_fallthru
      _
    // Predicated region
    $region10: #{tpu_custom_call.1} parent=1 // pred_check
      _
    $region11: #{tpu_custom_call.1} parent=1 // pred_check_branch
      %18 = sbr.rel (0) target = $region13
    $region12: #{tpu_custom_call.1} parent=1 // pred_region
      _
    $region13: #{tpu_custom_call.1} parent=1 // pred_fallthru
      _
    // Predicated region
    $region14: #{tpu_custom_call.1} parent=1 // pred_check
      _
    $region15: #{tpu_custom_call.1} parent=1 // pred_check_branch
      %20 = sbr.rel (0) target = $region17
    $region16: #{tpu_custom_call.1} parent=1 // pred_region
      _
    $region17: #{tpu_custom_call.1} parent=1 // pred_fallthru
      _
    // Predicated region
    $region18: #{tpu_custom_call.1} parent=1 // pred_check
      _
    $region19: #{tpu_custom_call.1} parent=1 // pred_check_branch
      %22 = sbr.rel (0) target = $region21
    $region20: #{tpu_custom_call.1} parent=1 // pred_region
      _
    $region21: #{tpu_custom_call.1} parent=1 // pred_fallthru
      _
    // Predicated region
    $region22: #{tpu_custom_call.1} parent=1 // pred_check
      _
    $region23: #{tpu_custom_call.1} parent=1 // pred_check_branch
      %24 = sbr.rel (0) target = $region25
    $region24: #{tpu_custom_call.1} parent=1 // pred_region
      _
    $region25: #{tpu_custom_call.1} parent=1 // pred_fallthru
      _
    %v25 = vld [vmem:[%s0] sm:$0xff]
    %v26 = vld [vmem:[%s0 + $0x8] sm:$0xff]
    %v27 = vld [vmem:[%s2] sm:$0xff]
    %v28 = vld [vmem:[%s2 + $0x8] sm:$0xff]
    %v29 = vadd.f32 %v25, %v27
    %v30 = vadd.f32 %v26, %v28
    %v31 = vld [vmem:[%s1] sm:$0xff]
    %v32 = vld [vmem:[%s1 + $0x8] sm:$0xff]
    %v33 = vsub.f32 %v29, %v31
    %v34 = vsub.f32 %v30, %v32
    %v35 = vld [vmem:[%s4] sm:$0xff]
    %v36 = vld [vmem:[%s4 + $0x8] sm:$0xff]
    %v37 = vld [vmem:[%s4 + $0x10] sm:$0xff]
    %v38 = vld [vmem:[%s4 + $0x18] sm:$0xff]
    %v39 = vld [vmem:[%s4 + $0x20] sm:$0xff]
    %v40 = vld [vmem:[%s4 + $0x28] sm:$0xff]
    %v41 = vld [vmem:[%s4 + $0x30] sm:$0xff]
    %v42 = vld [vmem:[%s4 + $0x38] sm:$0xff]
    %v43 = vld [vmem:[%s4 + $0x40] sm:$0xff]
    %v44 = vld [vmem:[%s4 + $0x48] sm:$0xff]
    %v45 = vld [vmem:[%s4 + $0x50] sm:$0xff]
    %v46 = vld [vmem:[%s4 + $0x58] sm:$0xff]
    %v47 = vld [vmem:[%s4 + $0x60] sm:$0xff]
    %v48 = vld [vmem:[%s4 + $0x68] sm:$0xff]
    %v49 = vld [vmem:[%s4 + $0x70] sm:$0xff]
    %v50 = vld [vmem:[%s4 + $0x78] sm:$0xff]
    %s51 = sld [smem:[#allocation2]]
    %v52 = vstv %s51
    %53 = vmatpush.msra.mxu0 %v50
    %54 = vmatpush.msra.mxu0 %v49
    %55 = vmatpush.msra.mxu0 %v48
    %56 = vmatpush.msra.mxu0 %v47
    %57 = vmatpush.msra.mxu0 %v46
    %58 = vmatpush.msra.mxu0 %v45
    %59 = vmatpush.msra.mxu0 %v44
    %60 = vmatpush.msra.mxu0 %v43
    %61 = vmatpush.msra.mxu0 %v42
    %62 = vmatpush.msra.mxu0 %v41
    %63 = vmatpush.msra.mxu0 %v40
    %64 = vmatpush.msra.mxu0 %v39
    %65 = vmatpush.msra.mxu0 %v38
    %66 = vmatpush.msra.mxu0 %v37
    %67 = vmatpush.msra.mxu0 %v36
    %68 = vmatpush.msra.mxu0 %v35
    %69 = vmatmul.f32.gmra.mxu0 %v33
    %v70 = vpop.f32.mrf.mxu0
    %v71 = vadd.f32 %v52, %v70
    %72 = vmatmul.f32.gmra.mxu0 %v34
    %v73 = vpop.f32.mrf.mxu0
    %v74 = vadd.f32 %v52, %v73
    %75 = vdwg.mxu0
    %v76 = vld [vmem:[%s3] sm:$0xff]
    %v77 = vld [vmem:[%s3 + $0x8] sm:$0xff]
    %v78 = vmax.f32 %v71, 0.0
    %v79 = vmax.f32 %v74, 0.0
    %v80 = vmul.f32 %v71, %v76
    %v81 = vmul.f32 %v74, %v77
    %v82 = vsub.f32 %v78, %v80
    %v83 = vsub.f32 %v79, %v81
    %v84 = vand.u32 2147483647, %v71
    %v85 = vand.u32 2147483647, %v74
    %v86 = vsub.f32 0.0, %v84
    %v87 = vsub.f32 0.0, %v85
    %v88 = vmul.f32 %v86, 1.442695
    %v89 = vpow.pop %v88
    %v90 = vmul.f32 %v87, 1.442695
    %v91 = vpow.pop %v90
    %v92 = vadd.f32 %v89, 1.0
    %v93 = vlog2.pop %v92
    %v94 = vmul.f32 %v93, 0.6931472
    %v95 = vmul.f32 -0.5, %v89
    %v96 = vadd.f32 %v95, 1.0
    %v97 = vmul.f32 %v96, %v89
    %v98 = vand.u32 2147483647, %v89
    %vm99 = vcmp.lt.f32.partialorder %v98, 0.0004427343
    %v100 = vsel %vm99, %v97, %v94
    %v101 = vadd.f32 %v91, 1.0
    %v102 = vlog2.pop %v101
    %v103 = vmul.f32 %v102, 0.6931472
    %v104 = vmul.f32 -0.5, %v91
    %v105 = vadd.f32 %v104, 1.0
    %v106 = vmul.f32 %v105, %v91
    %v107 = vand.u32 2147483647, %v91
    %vm108 = vcmp.lt.f32.partialorder %v107, 0.0004427343
    %v109 = vsel %vm108, %v106, %v103
    %v110 = vadd.f32 %v82, %v100
    %v111 = vadd.f32 %v83, %v109
    %vm112 = vcmask 31744
    %v113 = vsel %vm112, %v110, 0.0
    %v114 = vsel %vm112, %v111, 0.0
    %v115 = vadd.f32 %v113, %v114
    %116 = vadd.xlane.f32.xlu0 %v115
    %v117 = vpop.xlane.xlu0 %116
    %v118 = vrot.slane %v117, 4
    %v119 = vadd.f32 %v117, %v118
    %v120 = vrot.slane %v119, 2
    %v121 = vadd.f32 %v119, %v120
    %v122 = vrot.slane %v121, 1
    %v123 = vadd.f32 %v121, %v122
    %s124 = vtos %v123
    %v125 = vstv %s124
    %126 = vst [vmem:[#allocation3] sm:$0xff] %v125
    // Predicated region
    $region26: #{tpu_custom_call.1} parent=1 // pred_check
      _
    $region27: #{tpu_custom_call.1} parent=1 // pred_check_branch
      %128 = sbr.rel (0) target = $region29
    $region28: #{tpu_custom_call.1} parent=1 // pred_region
      %130 = vsyncadd [#allocation4], 0
      %s132 = sshll.u32 [#allocation3], 4
      %s133 = int_to_ptr.vmem [resolvable:$true] %s132
      %s134 = sshll.u32 %s6, 4
      %s135 = int_to_ptr.hbm [resolvable:$true] %s134
      %137 = dma.vmem_to_hbm [thread:$0]  %s133, 128, %s135, [#allocation4]
    $region29: #{tpu_custom_call.1} parent=1 // pred_fallthru
      _
    // Predicated region
    $region30: #{tpu_custom_call.1} parent=1 // pred_check
      _
    $region31: #{tpu_custom_call.1} parent=1 // pred_check_branch
      %139 = sbr.rel (0) target = $region33
    $region32: #{tpu_custom_call.1} parent=1 // pred_region
      %141 = dma.done [#allocation4], 128
    $region33: #{tpu_custom_call.1} parent=1 // pred_fallthru
      _
    %142 = vsyncpa [#allocation4], 1

</llo_original>
